<compile_context>
chip_gen: v7x
topology: tpu7x:2x2x1
jax: 0.10.0
libtpu: 0.0.40
codegen_flags: <defaults>
</compile_context>

<pallas_src>
import functools

import jax
import jax.numpy as jnp
from jax import lax
from jax.experimental import pallas as pl
from jax.experimental.pallas import tpu as pltpu

_VMEM_LIMIT_BYTES = 48 * 1024 * 1024  # > v5e's 16 MiB default, < v7x's 64 MiB physical
_ROW_TILE_TARGET = 256                # keeps (TQ, B) f32 logits blocks small on v7x
_PAD_SUB = 8                          # per-tile partial outputs padded to (8, 128) blocks


def _pick_row_tile(n, target=_ROW_TILE_TARGET):
    """Largest divisor of n that is <= target (row-tile size)."""
    t = min(n, target)
    while n % t != 0:
        t -= 1
    return t


def _compiler_params():
    return pltpu.CompilerParams(
        dimension_semantics=("parallel",),      # per-tile partials -> megacore-shardable
        vmem_limit_bytes=_VMEM_LIMIT_BYTES,
    )


def _l2norm(x):
    # F.normalize(x, dim=-1, p=2): x / max(||x||, 1e-12)
    return x * lax.rsqrt(jnp.maximum(jnp.sum(x * x, axis=-1, keepdims=True), 1e-24))


def _partial_out_shape(nt):
    return jax.ShapeDtypeStruct((nt * _PAD_SUB, 128), jnp.float32)


def _partial_out_spec():
    return pl.BlockSpec((_PAD_SUB, 128), lambda i: (i, 0))


def _reduce_partials(p):
    # Each tile broadcast its scalar partial over an (8, 128) block; pick one lane.
    return jnp.sum(p[::_PAD_SUB, 0])


# ----------------------------------------------------------------------------
# Prologue: L2-normalize rows and cast to bf16 (keys for the MXU), row-tiled
# ----------------------------------------------------------------------------
def _norm_bf16_kernel(x_ref, o_ref):
    o_ref[...] = _l2norm(x_ref[...].astype(jnp.float32)).astype(o_ref.dtype)


def normalize_bf16_pallas(x):
    n, d = x.shape
    tr = _pick_row_tile(n)
    nt = n // tr
    return pl.pallas_call(
        _norm_bf16_kernel,
        out_shape=jax.ShapeDtypeStruct((n, d), jnp.bfloat16),
        grid=(nt,),
        in_specs=[pl.BlockSpec((tr, d), lambda i: (i, 0))],
        out_specs=pl.BlockSpec((tr, d), lambda i: (i, 0)),
        compiler_params=_compiler_params(),
    )(x)


# ----------------------------------------------------------------------------
# SimCLR (SIMCLRLoss.forward), row-tiled
# ----------------------------------------------------------------------------
def _simclr_kernel(qa_ref, qb_ref, ka_ref, kb_ref, loss_ref, corr_ref, *, tau, tq, nrows):
    f32, bf16 = jnp.float32, jnp.bfloat16
    inv_tau = f32(1.0 / tau)
    start = pl.multiple_of(pl.program_id(0) * tq, tq)

    # Query rows of this tile, normalized in f32 (cheap: only tq rows).
    ra = _l2norm(qa_ref[...].astype(f32))
    rb = _l2norm(qb_ref[...].astype(f32))

    # CE target = diagonal logit = <qa_i, qb_i>/tau, computed in f32.
    tgt = jnp.sum(ra * rb, axis=-1, keepdims=True) * inv_tau            # (tq, 1)

    # Fold 1/tau into the row operand only; bf16 operands, f32 accumulate.
    ra_s = (ra * inv_tau).astype(bf16)
    rb_s = (rb * inv_tau).astype(bf16)
    ka = ka_ref[...]                                                    # (nrows, D) bf16
    kb = kb_ref[...]

    dn = (((1,), (1,)), ((), ()))       # contract last dims: A @ B.T, no transpose
    l_ab = lax.dot_general(ra_s, kb, dn, preferred_element_type=f32)    # (tq, nrows)
    l_aa = lax.dot_general(ra_s, ka, dn, preferred_element_type=f32)
    l_ba = lax.dot_general(rb_s, ka, dn, preferred_element_type=f32)
    l_bb = lax.dot_general(rb_s, kb, dn, preferred_element_type=f32)

    row_g = start + lax.broadcasted_iota(jnp.int32, (tq, nrows), 0)
    col = lax.broadcasted_iota(jnp.int32, (tq, nrows), 1)
    diag = row_g == col
    l_aa = jnp.where(diag, f32(-1e9), l_aa)   # self-similarity mask, no mask array
    l_bb = jnp.where(diag, f32(-1e9), l_bb)

    def _lse2(lp, ln):
        m = jnp.maximum(jnp.max(lp, axis=-1, keepdims=True),
                        jnp.max(ln, axis=-1, keepdims=True))
        s = (jnp.sum(jnp.exp(lp - m), axis=-1, keepdims=True)
             + jnp.sum(jnp.exp(ln - m), axis=-1, keepdims=True))
        return jnp.log(s) + m, m

    lse_a, m_a = _lse2(l_ab, l_aa)
    lse_b, _ = _lse2(l_ba, l_bb)
    loss_rows = (lse_a - tgt) + (lse_b - tgt)                            # (tq, 1)

    # Fused accuracy over cat([l_ab, l_aa], 1), reusing the row max m_a.
    sentinel = jnp.int32(2 * nrows)
    cand_ab = jnp.where(l_ab == m_a, col, sentinel)            # columns 0..nrows-1
    cand_aa = jnp.where(l_aa == m_a, col + nrows, sentinel)    # columns nrows..2*nrows-1
    pred = jnp.minimum(jnp.min(cand_ab, axis=-1, keepdims=True),
                       jnp.min(cand_aa, axis=-1, keepdims=True))
    labels = start + lax.broadcasted_iota(jnp.int32, (tq, 1), 0)
    corr_rows = (pred == labels).astype(f32)

    # Lane-dense per-tile partials (reduced in the wrapper).
    loss_ref[...] = jnp.broadcast_to(jnp.sum(loss_rows, axis=0, keepdims=True),
                                     loss_ref.shape)
    corr_ref[...] = jnp.broadcast_to(jnp.sum(corr_rows, axis=0, keepdims=True),
                                     corr_ref.shape)


def simclr_loss_pallas(aug1_embed, aug2_embed, temperature=0.1):
    B, D = aug1_embed.shape
    ka_n = normalize_bf16_pallas(aug1_embed)     # keys normalized once, bf16
    kb_n = normalize_bf16_pallas(aug2_embed)
    tq = _pick_row_tile(B)
    nt = B // tq
    kernel = functools.partial(_simclr_kernel, tau=float(temperature), tq=tq, nrows=B)
    loss_p, corr_p = pl.pallas_call(
        kernel,
        out_shape=(_partial_out_shape(nt), _partial_out_shape(nt)),
        grid=(nt,),
        in_specs=[pl.BlockSpec((tq, D), lambda i: (i, 0)),    # q_a rows (raw f32, streamed)
                  pl.BlockSpec((tq, D), lambda i: (i, 0)),    # q_b rows (raw f32, streamed)
                  pl.BlockSpec((B, D), lambda i: (0, 0)),     # k_a keys (bf16, resident)
                  pl.BlockSpec((B, D), lambda i: (0, 0))],    # k_b keys (bf16, resident)
        out_specs=(_partial_out_spec(), _partial_out_spec()),
        compiler_params=_compiler_params(),
    )(aug1_embed, aug2_embed, ka_n, kb_n)
    loss = _reduce_partials(loss_p) / jnp.float32(2 * B)      # (mean_a + mean_b) / 2
    acc = 100.0 * _reduce_partials(corr_p) / jnp.float32(B)
    return loss, acc


# ----------------------------------------------------------------------------
# CLIP contrastive losses + clip accuracy, row-tiled
# ----------------------------------------------------------------------------
def _clip_kernel(scale_ref, i1_ref, i2_ref, tx_ref, k1_ref, k2_ref, kt_ref,
                 c1_ref, c2_ref, corr_ref, *, tq, bs):
    f32, bf16 = jnp.float32, jnp.bfloat16
    start = pl.multiple_of(pl.program_id(0) * tq, tq)
    s = scale_ref[...].astype(f32)                       # (1, 1) logit_scale

    # Query-row tiles, normalized in f32.
    im1_t = _l2norm(i1_ref[...].astype(f32))
    im2_t = _l2norm(i2_ref[...].astype(f32))
    txt_t = _l2norm(tx_ref[...].astype(f32))

    # CE targets (diagonal logits), f32.
    tgt1 = jnp.sum(im1_t * txt_t, axis=-1, keepdims=True) * s           # (tq, 1)
    tgt2 = jnp.sum(im2_t * txt_t, axis=-1, keepdims=True) * s

    # Fold logit_scale into the row operand; bf16 operands, f32 accumulate.
    im1_r = (im1_t * s).astype(bf16)
    im2_r = (im2_t * s).astype(bf16)
    txt_r = (txt_t * s).astype(bf16)

    dn = (((1,), (1,)), ((), ()))
    li1 = lax.dot_general(im1_r, kt_ref[...], dn, preferred_element_type=f32)  # (tq, bs)
    lt1 = lax.dot_general(txt_r, k1_ref[...], dn, preferred_element_type=f32)
    li2 = lax.dot_general(im2_r, kt_ref[...], dn, preferred_element_type=f32)
    lt2 = lax.dot_general(txt_r, k2_ref[...], dn, preferred_element_type=f32)

    def _lse(l):
        m = jnp.max(l, axis=-1, keepdims=True)
        return jnp.log(jnp.sum(jnp.exp(l - m), axis=-1, keepdims=True)) + m, m

    lse_i1, _ = _lse(li1)
    lse_t1, _ = _lse(lt1)
    lse_i2, m_i2 = _lse(li2)
    lse_t2, _ = _lse(lt2)

    c1_rows = (lse_i1 - tgt1) + (lse_t1 - tgt1)
    c2_rows = (lse_i2 - tgt2) + (lse_t2 - tgt2)

    # clip accuracy uses the *second* logits_per_image (the PyTorch code rebinds
    # the variable); fused here, reusing m_i2 from its LSE.
    col = lax.broadcasted_iota(jnp.int32, (tq, bs), 1)
    labels = start + lax.broadcasted_iota(jnp.int32, (tq, 1), 0)
    cand = jnp.where(li2 == m_i2, col, jnp.int32(bs))
    pred = jnp.min(cand, axis=-1, keepdims=True)
    corr_rows = (pred == labels).astype(f32)

    c1_ref[...] = jnp.broadcast_to(jnp.sum(c1_rows, axis=0, keepdims=True), c1_ref.shape)
    c2_ref[...] = jnp.broadcast_to(jnp.sum(c2_rows, axis=0, keepdims=True), c2_ref.shape)
    corr_ref[...] = jnp.broadcast_to(jnp.sum(corr_rows, axis=0, keepdims=True),
                                     corr_ref.shape)


def clip_loss_pallas(image_embed, text_embed, logit_scale):
    bs, D = text_embed.shape
    im1, im2 = image_embed[:bs], image_embed[bs:]
    k1_n = normalize_bf16_pallas(im1)            # keys normalized once, bf16
    k2_n = normalize_bf16_pallas(im2)
    kt_n = normalize_bf16_pallas(text_embed)
    tq = _pick_row_tile(bs)
    nt = bs // tq
    scale = jnp.reshape(jnp.asarray(logit_scale, jnp.float32), (1, 1))
    kernel = functools.partial(_clip_kernel, tq=tq, bs=bs)
    c1_p, c2_p, corr_p = pl.pallas_call(
        kernel,
        out_shape=(_partial_out_shape(nt),) * 3,
        grid=(nt,),
        in_specs=[pl.BlockSpec((1, 1), lambda i: (0, 0)),
                  pl.BlockSpec((tq, D), lambda i: (i, 0)),    # image_1 rows (raw f32)
                  pl.BlockSpec((tq, D), lambda i: (i, 0)),    # image_2 rows (raw f32)
                  pl.BlockSpec((tq, D), lambda i: (i, 0)),    # text rows (raw f32)
                  pl.BlockSpec((bs, D), lambda i: (0, 0)),    # image_1 keys (bf16)
                  pl.BlockSpec((bs, D), lambda i: (0, 0)),    # image_2 keys (bf16)
                  pl.BlockSpec((bs, D), lambda i: (0, 0))],   # text keys (bf16)
        out_specs=(_partial_out_spec(),) * 3,
        compiler_params=_compiler_params(),
    )(scale, im1, im2, text_embed, k1_n, k2_n, kt_n)
    contra_1 = _reduce_partials(c1_p) / jnp.float32(2 * bs)
    contra_2 = _reduce_partials(c2_p) / jnp.float32(2 * bs)
    clip_acc = 100.0 * _reduce_partials(corr_p) / jnp.float32(bs)
    return contra_1, contra_2, clip_acc


# ----------------------------------------------------------------------------
# BYOL regression loss: mean(2 - 2 * cos(x, cat([e, e])))
# ----------------------------------------------------------------------------
def _byol_kernel(x1_ref, x2_ref, e_ref, out_ref):
    f32 = jnp.float32
    x1 = _l2norm(x1_ref[...].astype(f32))
    x2 = _l2norm(x2_ref[...].astype(f32))
    e = _l2norm(e_ref[...].astype(f32))
    d = (jnp.sum(x1 * e, axis=-1, keepdims=True)
         + jnp.sum(x2 * e, axis=-1, keepdims=True))                     # (tq, 1)
    part = jnp.sum(f32(4.0) - f32(2.0) * d, axis=0, keepdims=True)      # (1, 1)
    out_ref[...] = jnp.broadcast_to(part, out_ref.shape)


def byol_loss_pallas(im_features, im_features_e):
    bs, Db = im_features_e.shape     # im_features is (2*bs, Db)
    x1, x2 = im_features[:bs], im_features[bs:]
    tq = _pick_row_tile(bs)
    nt = bs // tq
    part = pl.pallas_call(
        _byol_kernel,
        out_shape=_partial_out_shape(nt),
        grid=(nt,),
        in_specs=[pl.BlockSpec((tq, Db), lambda i: (i, 0)),   # first half of x
                  pl.BlockSpec((tq, Db), lambda i: (i, 0)),   # second half of x
                  pl.BlockSpec((tq, Db), lambda i: (i, 0))],  # e (used twice)
        out_specs=_partial_out_spec(),
        compiler_params=_compiler_params(),
    )(x1, x2, im_features_e)
    return _reduce_partials(part) / jnp.float32(2 * bs)


# ----------------------------------------------------------------------------
# ACLIPLoss.forward
# ----------------------------------------------------------------------------
def aclip_loss_pallas(outputs, temperature=0.1):
    text_embed = outputs["text_embed"]
    bs = text_embed.shape[0]

    # TODO(synk): utils.all_gather_batch_with_grad / get_rank / get_world_size are
    # distributed-only; single-device semantics (world_size=1, rank=0) are used here.
    ssl_embed = outputs["image_ssl_embed"]
    ssl_loss, ssl_acc = simclr_loss_pallas(ssl_embed[:bs], ssl_embed[bs:], temperature)

    im_byol_loss = byol_loss_pallas(outputs["byol_feats"], outputs["byol_feats_e"])

    contra_1, contra_2, clip_acc = clip_loss_pallas(
        outputs["image_embed"], text_embed, outputs["logit_scale"])

    loss = 0.5 * contra_1 + 0.5 * contra_2 + ssl_loss + 2.0 * im_byol_loss
    return {
        "loss": loss,
        "simclr_loss": ssl_loss,
        "im_byol_loss": im_byol_loss,
        "contra_loss_1": contra_1,
        "contra_loss_2": contra_2,
        "clip_acc": clip_acc,
        "ssl_acc": ssl_acc,  # extra diagnostic (computed inside SIMCLRLoss.forward)
    }


# ----------------------------------------------------------------------------
# Pure-JAX f32 reference (faithful to the PyTorch module, single device)
# ----------------------------------------------------------------------------
def _ce_ref(logits, labels):
    logp = jax.nn.log_softmax(logits, axis=-1)
    return -jnp.mean(logp[jnp.arange(logits.shape[0]), labels])


def _aclip_ref(outputs, temperature=0.1):
    f32 = jnp.float32

    def norm(x):
        x = x.astype(f32)
        return x / jnp.maximum(jnp.linalg.norm(x, axis=-1, keepdims=True), 1e-12)

    text_embed = outputs["text_embed"].astype(f32)
    bs = text_embed.shape[0]
    labels = jnp.arange(bs)

    # SimCLR
    ssl = outputs["image_ssl_embed"].astype(f32)
    qa, qb = norm(ssl[:bs]), norm(ssl[bs:])
    masks = jax.nn.one_hot(labels, bs, dtype=f32) * 1e9
    laa = qa @ qa.T / temperature - masks
    lbb = qb @ qb.T / temperature - masks
    lab = qa @ qb.T / temperature
    lba = qb @ qa.T / temperature
    ssl_loss = (_ce_ref(jnp.concatenate([lab, laa], 1), labels)
                + _ce_ref(jnp.concatenate([lba, lbb], 1), labels)) / 2
    ssl_acc = 100.0 * jnp.mean(
        (jnp.argmax(jnp.concatenate([lab, laa], 1), axis=-1) == labels).astype(f32))

    # BYOL
    x = norm(outputs["byol_feats"])
    y = norm(jnp.concatenate([outputs["byol_feats_e"], outputs["byol_feats_e"]], 0))
    im_byol_loss = jnp.mean(2.0 - 2.0 * jnp.sum(x * y, axis=-1))

    # CLIP
    s = jnp.asarray(outputs["logit_scale"], f32)
    img_n = norm(outputs["image_embed"])
    txt_n = norm(text_embed)
    im1, im2 = img_n[:bs], img_n[bs:]
    li1 = s * im1 @ txt_n.T
    lt1 = s * txt_n @ im1.T
    li2 = s * im2 @ txt_n.T
    lt2 = s * txt_n @ im2.T
    contra_1 = (_ce_ref(li1, labels) + _ce_ref(lt1, labels)) / 2
    contra_2 = (_ce_ref(li2, labels) + _ce_ref(lt2, labels)) / 2
    clip_acc = 100.0 * jnp.mean((jnp.argmax(li2, axis=-1) == labels).astype(f32))

    loss = 0.5 * contra_1 + 0.5 * contra_2 + ssl_loss + 2.0 * im_byol_loss
    return {"loss": loss, "simclr_loss": ssl_loss, "im_byol_loss": im_byol_loss,
            "contra_loss_1": contra_1, "contra_loss_2": contra_2,
            "clip_acc": clip_acc, "ssl_acc": ssl_acc}


if __name__ == "__main__":
    bs, D, Dssl, Db = 8, 32, 32, 32
    key = jax.random.PRNGKey(0)
    ks = jax.random.split(key, 8)

    # Correlated positives so that both accuracies have a wide argmax margin.
    base_img = jax.random.normal(ks[0], (bs, D), jnp.float32)
    image_embed = jnp.concatenate(
        [base_img + 0.05 * jax.random.normal(ks[1], (bs, D), jnp.float32),
         base_img + 0.05 * jax.random.normal(ks[2], (bs, D), jnp.float32)], axis=0)
    text_embed = base_img + 0.05 * jax.random.normal(ks[3], (bs, D), jnp.float32)

    base_ssl = jax.random.normal(ks[4], (bs, Dssl), jnp.float32)
    image_ssl_embed = jnp.concatenate(
        [base_ssl + 0.05 * jax.random.normal(ks[5], (bs, Dssl), jnp.float32),
         base_ssl + 0.05 * jax.random.normal(ks[6], (bs, Dssl), jnp.float32)], axis=0)

    byol_feats = jax.random.normal(ks[7], (2 * bs, Db), jnp.float32)
    byol_feats_e = jax.random.normal(jax.random.PRNGKey(1), (bs, Db), jnp.float32)

    outputs = {
        "image_embed": image_embed,           # (2*bs, D)
        "text_embed": text_embed,             # (bs, D)
        "logit_scale": jnp.float32(10.0),     # scalar
        "image_ssl_embed": image_ssl_embed,   # (2*bs, Dssl)
        "byol_feats": byol_feats,             # (2*bs, Db)
        "byol_feats_e": byol_feats_e,         # (bs, Db)
    }

    out = aclip_loss_pallas(outputs, temperature=0.1)
    for v in out.values():
        jax.block_until_ready(v)

    ref = _aclip_ref(outputs, temperature=0.1)
    for k in ["loss", "simclr_loss", "im_byol_loss", "contra_loss_1", "contra_loss_2"]:
        assert jnp.allclose(out[k], ref[k], atol=5e-2, rtol=5e-2), (k, out[k], ref[k])
    assert jnp.allclose(out["clip_acc"], ref["clip_acc"], atol=1e-3), (
        out["clip_acc"], ref["clip_acc"])
    assert jnp.allclose(out["ssl_acc"], ref["ssl_acc"], atol=1e-3), (
        out["ssl_acc"], ref["ssl_acc"])

    print("KERNEL_OK")
</pallas_src>

<mosaic_0001>
module attributes {stable_mosaic.version = 11 : i64} {
  func.func @_norm_bf16_kernel(%arg0: i32, %arg1: memref<8x32xf32, #tpu.memory_space<vmem>>, %arg2: memref<8x32xbf16, #tpu.memory_space<vmem>>) attributes {dimension_semantics = [#tpu.dimension_semantics<parallel>], iteration_bounds = array<i64: 1>, scalar_prefetch = 0 : i64, scratch_operands = 0 : i64, tpu.core_type = #tpu.core_type<tc>, window_params = [{transform_indices = @transform_0, window_bounds = array<i64: 8, 32>}, {transform_indices = @transform_1, window_bounds = array<i64: 8, 32>}]} {
    %c0 = arith.constant 0 : index
    %c0_0 = arith.constant 0 : index
    %0 = vector.load %arg1[%c0, %c0_0] : memref<8x32xf32, #tpu.memory_space<vmem>>, vector<8x32xf32>
    %1 = arith.mulf %0, %0 : vector<8x32xf32>
    %cst = arith.constant dense<0.000000e+00> : vector<8xf32>
    %2 = vector.multi_reduction <add>, %1, %cst [1] : vector<8x32xf32> to vector<8xf32>
    %3 = vector.shape_cast %2 : vector<8xf32> to vector<8x1xf32>
    %cst_1 = arith.constant 1.000000e-24 : f32
    %4 = vector.broadcast %cst_1 : f32 to vector<8x1xf32>
    %5 = arith.maximumf %3, %4 : vector<8x1xf32>
    %6 = math.rsqrt %5 : vector<8x1xf32>
    %7 = vector.broadcast %6 : vector<8x1xf32> to vector<8x32xf32>
    %8 = arith.mulf %0, %7 : vector<8x32xf32>
    %9 = arith.truncf %8 : vector<8x32xf32> to vector<8x32xbf16>
    %c0_2 = arith.constant 0 : index
    %c0_3 = arith.constant 0 : index
    %10 = vector.load %arg2[%c0_2, %c0_3] : memref<8x32xbf16, #tpu.memory_space<vmem>>, vector<8x32xbf16>
    tpu.vector_store %arg2[%c0_2, %c0_3], %9 {strides = array<i32>} : memref<8x32xbf16, #tpu.memory_space<vmem>>, vector<8x32xbf16>,
    return
  }
  func.func @transform_0(%arg0: i32) -> (i32, i32) {
    %c0_i32 = arith.constant 0 : i32
    %c0_i32_0 = arith.constant 0 : i32
    return %arg0, %c0_i32 : i32, i32
  }
  func.func @transform_1(%arg0: i32) -> (i32, i32) {
    %c0_i32 = arith.constant 0 : i32
    %c0_i32_0 = arith.constant 0 : i32
    return %arg0, %c0_i32 : i32, i32
  }
}

</mosaic_0001>

<llo_original>
// kernel: tpu_custom_call.1
$region0: #{tpu_custom_call.1}
  #allocation0 [shape = 'u32[]', space=smem, size = 0x4, offset = 0x4, fixed_abs, tag = 'smem constant byte address 0x4 - core index']
  #allocation1 [shape = 'u32[144,128]{1,0:T(1,128)}', space=vmem, size = 0x12000, scoped, tag = 'internal scratch']
  %s0 = inlined_call_operand.hbm [shape: f32[8,32], index: 0, kind: input, shape index: {}]
  %s1 = inlined_call_operand.hbm [shape: bf16[8,32], index: 1, kind: output, shape index: {}]
  %s2 = sld [smem:[#allocation0]]
  $region18: #{tpu_custom_call.1} parent=0
    _
  %s4 = ssub.s32 1, %s2
  %s5 = scalar_select 0, %s4, %s2
  $region1: #{tpu_custom_call.1} parent=0
    #allocation2 [shape = 'u8[4096]{0}', space=vmem, size = 0x1000, scoped, tag = 'input window, operand 0, single buffered']
    #allocation3 [shape = 's32[1]{0}', space=sflag, size = 0x4, scoped, tag = 'scoped memory for tpu_custom_call.1']
    #allocation4 [shape = 's32[1]{0}', space=sflag, size = 0x4, scoped, tag = 'scoped memory for tpu_custom_call.1']
    #allocation5 [shape = 'u8[2048]{0}', space=vmem, size = 0x800, scoped, tag = 'output window, operand 0, single buffered']
    %6 = vsyncpa [#allocation3], 0
    %7 = vsyncpa [#allocation4], 0
    // Predicated region
    $region2: #{tpu_custom_call.1} parent=1 // pred_check
      _
    $region3: #{tpu_custom_call.1} parent=1 // pred_check_branch
      %9 = sbr.rel (0) target = $region5
    $region4: #{tpu_custom_call.1} parent=1 // pred_region
      %s11 = ssub.s32 128, 128
      %12 = vsyncadd [#allocation3], %s11
      %s14 = sshll.u32 [#allocation2], 4
      %s15 = int_to_ptr.vmem [resolvable:$true] %s14
      %17 = dma.hbm_to_vmem [thread:$0]  %s0, 128, %s15, [#allocation3]
    $region5: #{tpu_custom_call.1} parent=1 // pred_fallthru
      _
    // Predicated region
    $region6: #{tpu_custom_call.1} parent=1 // pred_check
      _
    $region7: #{tpu_custom_call.1} parent=1 // pred_check_branch
      %19 = sbr.rel (0) target = $region9
    $region8: #{tpu_custom_call.1} parent=1 // pred_region
      %20 = dma.done [#allocation3], 128
    $region9: #{tpu_custom_call.1} parent=1 // pred_fallthru
      _
    %v21 = vld [vmem:[#allocation2] sm:$0xff]
    %v22 = vmul.f32 %v21, %v21
    %vm23 = vcmask 261120
    %v24 = vsel %vm23, %v22, 0.0
    %25 = vadd.xlane.f32.xlu0 %v24
    %v26 = vpop.xlane.xlu0 %25
    %v27 = vmax.f32 %v26, 1e-24
    %v28 = vrsqrt.pop %v27
    %v29 = vmul.f32 %v21, %v28
    %v30 = vpack.c.bf16 %v29, %v29
    %vm31 = vcmask 257024
    %32 = vst.msk [vmem:[#allocation5] sm:$0xf] %vm31, %v30
    // Predicated region
    $region10: #{tpu_custom_call.1} parent=1 // pred_check
      _
    $region11: #{tpu_custom_call.1} parent=1 // pred_check_branch
      %34 = sbr.rel (0) target = $region13
    $region12: #{tpu_custom_call.1} parent=1 // pred_region
      %s36 = ssub.s32 64, 64
      %37 = vsyncadd [#allocation4], %s36
      %s39 = sshll.u32 [#allocation5], 4
      %s40 = int_to_ptr.vmem [resolvable:$true] %s39
      %42 = dma.vmem_to_hbm [thread:$0]  %s40, 64, %s1, [#allocation4]
    $region13: #{tpu_custom_call.1} parent=1 // pred_fallthru
      _
    // Predicated region
    $region14: #{tpu_custom_call.1} parent=1 // pred_check
      _
    $region15: #{tpu_custom_call.1} parent=1 // pred_check_branch
      %44 = sbr.rel (0) target = $region17
    $region16: #{tpu_custom_call.1} parent=1 // pred_region
      %45 = dma.done [#allocation4], 64
    $region17: #{tpu_custom_call.1} parent=1 // pred_fallthru
      _
    %46 = vsyncpa [#allocation3], 1
    %47 = vsyncpa [#allocation4], 1

</llo_original>
